<compile_context>
chip_gen: v7x
topology: tpu7x:2x2x1
jax: 0.10.0
libtpu: 0.0.40
codegen_flags: <defaults>
</compile_context>

<pallas_src>
import jax
import jax.numpy as jnp
from jax.experimental import pallas as pl
from jax.experimental.pallas import tpu as pltpu


def policy_kernel(x_ref, w1_ref, b1_ref, w2_ref, b2_ref, out_ref):
    # Layer 1: x @ W1^T + b1   (bf16 operands, f32 accumulate)
    x = x_ref[...]                                              # [TB, S] bf16
    h = jnp.dot(x, w1_ref[...], preferred_element_type=jnp.float32) + b1_ref[...]
    # ReLU (f32 on the VPU)
    h = jnp.maximum(h, 0.0)
    # Layer 2: h @ W2^T + b2   (cast hidden to bf16 for the MXU, f32 accumulate)
    logits = jnp.dot(h.astype(w2_ref.dtype), w2_ref[...],
                     preferred_element_type=jnp.float32) + b2_ref[...]
    # Numerically stable softmax over the action (last) axis, all in f32.
    m = jnp.max(logits, axis=-1, keepdims=True)
    e = jnp.exp(logits - m)
    denom = jnp.sum(e, axis=-1, keepdims=True)
    out_ref[...] = (e * pl.reciprocal(denom, approx=True)).astype(out_ref.dtype)


def policy_net_forward(x, w1, b1, w2, b2, *, batch_tile=512):
    """x: [B, num_states] f32; w1: [64, num_states]; b1: [64];
    w2: [num_actions, 64]; b2: [num_actions]. Returns [B, num_actions] f32."""
    B, num_states = x.shape
    num_actions = w2.shape[0]
    hidden = w1.shape[0]

    # --- batch tiling (tile is a multiple of 16 to satisfy bf16 sublane packing)
    if B >= batch_tile:
        TB = batch_tile
    else:
        TB = ((B + 15) // 16) * 16
    num_tiles = pl.cdiv(B, TB)
    B_pad = num_tiles * TB
    if B_pad != B:
        x = jnp.pad(x, ((0, B_pad - B), (0, 0)))

    # --- glue: pre-transpose weights, bf16 matmul operands, 2-D biases (f32)
    x_b = x.astype(jnp.bfloat16)                       # [B_pad, S]
    w1_t = jnp.transpose(w1).astype(jnp.bfloat16)      # [S, 64]
    w2_t = jnp.transpose(w2).astype(jnp.bfloat16)      # [64, A]
    b1_2d = b1.reshape(1, -1).astype(jnp.float32)      # [1, 64]
    b2_2d = b2.reshape(1, -1).astype(jnp.float32)      # [1, A]

    # --- cost estimate for the XLA scheduler
    flops = 2 * B_pad * (num_states * hidden + hidden * num_actions)
    transcendentals = B_pad * num_actions
    bytes_accessed = (x_b.size * 2 + w1_t.size * 2 + w2_t.size * 2
                      + b1_2d.size * 4 + b2_2d.size * 4 + B_pad * num_actions * 4)

    grid_spec = pltpu.PrefetchScalarGridSpec(
        num_scalar_prefetch=0,
        grid=(num_tiles,),
        in_specs=[
            # x: one batch tile per grid step
            pl.BlockSpec((TB, num_states), lambda i: (i, 0)),
            # weights / biases: resident in VMEM across all steps
            pl.BlockSpec((num_states, hidden), lambda i: (0, 0)),
            pl.BlockSpec((1, hidden), lambda i: (0, 0)),
            pl.BlockSpec((hidden, num_actions), lambda i: (0, 0)),
            pl.BlockSpec((1, num_actions), lambda i: (0, 0)),
        ],
        out_specs=pl.BlockSpec((TB, num_actions), lambda i: (i, 0)),
    )

    out = pl.pallas_call(
        policy_kernel,
        out_shape=jax.ShapeDtypeStruct((B_pad, num_actions), jnp.float32),
        grid_spec=grid_spec,
        compiler_params=pltpu.CompilerParams(
            dimension_semantics=("parallel",)),
        cost_estimate=pl.CostEstimate(flops=flops,
                                      transcendentals=transcendentals,
                                      bytes_accessed=bytes_accessed),
    )(x_b, w1_t, b1_2d, w2_t, b2_2d)

    return out[:B]


def init_policy_net_params(key, num_states, num_actions):
    """Deterministic init mimicking PyTorch nn.Linear (uniform +-1/sqrt(fan_in))."""
    k1, k2, k3, k4 = jax.random.split(key, 4)
    bound1 = 1.0 / jnp.sqrt(jnp.float32(num_states))
    bound2 = 1.0 / jnp.sqrt(jnp.float32(64))
    w1 = jax.random.uniform(k1, (64, num_states), jnp.float32, -bound1, bound1)
    b1 = jax.random.uniform(k2, (64,), jnp.float32, -bound1, bound1)
    w2 = jax.random.uniform(k3, (num_actions, 64), jnp.float32, -bound2, bound2)
    b2 = jax.random.uniform(k4, (num_actions,), jnp.float32, -bound2, bound2)
    return w1, b1, w2, b2


def _reference(x, w1, b1, w2, b2):
    """Plain-JAX reference using the same bf16-operand / f32-accumulate scheme."""
    xb = x.astype(jnp.bfloat16)
    w1b = jnp.transpose(w1).astype(jnp.bfloat16)
    w2b = jnp.transpose(w2).astype(jnp.bfloat16)
    h = jnp.maximum(jnp.dot(xb, w1b, preferred_element_type=jnp.float32) + b1, 0.0)
    logits = jnp.dot(h.astype(jnp.bfloat16), w2b,
                     preferred_element_type=jnp.float32) + b2
    return jax.nn.softmax(logits, axis=-1)


if __name__ == "__main__":
    num_states = 16
    num_actions = 6

    key = jax.random.PRNGKey(0)
    kx, kp, kx2 = jax.random.split(key, 3)
    w1, b1, w2, b2 = init_policy_net_params(kp, num_states, num_actions)

    # --- small batch (single padded tile)
    batch = 4
    x = jax.random.normal(kx, (batch, num_states), jnp.float32)
    out = jax.block_until_ready(policy_net_forward(x, w1, b1, w2, b2))
    ref = _reference(x, w1, b1, w2, b2)
    assert out.shape == (batch, num_actions)
    assert jnp.allclose(out, ref, atol=5e-3), "mismatch vs reference (small batch)"
    assert jnp.allclose(jnp.sum(out, axis=-1), 1.0, atol=5e-3)

    # --- larger batch exercising multi-tile grid + batch padding
    batch2 = 1037
    x2 = jax.random.normal(kx2, (batch2, num_states), jnp.float32)
    out2 = jax.block_until_ready(policy_net_forward(x2, w1, b1, w2, b2))
    ref2 = _reference(x2, w1, b1, w2, b2)
    assert out2.shape == (batch2, num_actions)
    assert jnp.allclose(out2, ref2, atol=5e-3), "mismatch vs reference (large batch)"
    assert jnp.allclose(jnp.sum(out2, axis=-1), 1.0, atol=5e-3)

    print("KERNEL_OK")
</pallas_src>

<mosaic_0001>
module attributes {stable_mosaic.version = 11 : i64} {
  func.func @policy_kernel(%arg0: i32, %arg1: memref<16x16xbf16, #tpu.memory_space<vmem>>, %arg2: memref<16x64xbf16, #tpu.memory_space<vmem>>, %arg3: memref<1x64xf32, #tpu.memory_space<vmem>>, %arg4: memref<64x6xbf16, #tpu.memory_space<vmem>>, %arg5: memref<1x6xf32, #tpu.memory_space<vmem>>, %arg6: memref<16x6xf32, #tpu.memory_space<vmem>>) attributes {dimension_semantics = [#tpu.dimension_semantics<parallel>], iteration_bounds = array<i64: 1>, scalar_prefetch = 0 : i64, scratch_operands = 0 : i64, tpu.core_type = #tpu.core_type<tc>, window_params = [{transform_indices = @transform_0, window_bounds = array<i64: 16, 16>}, {pipeline_mode = #tpu.pipeline_mode<synchronous>, transform_indices = @transform_1, window_bounds = array<i64: 16, 64>}, {pipeline_mode = #tpu.pipeline_mode<synchronous>, transform_indices = @transform_2, window_bounds = array<i64: 1, 64>}, {pipeline_mode = #tpu.pipeline_mode<synchronous>, transform_indices = @transform_3, window_bounds = array<i64: 64, 6>}, {pipeline_mode = #tpu.pipeline_mode<synchronous>, transform_indices = @transform_4, window_bounds = array<i64: 1, 6>}, {transform_indices = @transform_5, window_bounds = array<i64: 16, 6>}]} {
    %c0 = arith.constant 0 : index
    %c0_0 = arith.constant 0 : index
    %0 = vector.load %arg1[%c0, %c0_0] : memref<16x16xbf16, #tpu.memory_space<vmem>>, vector<16x16xbf16>
    %c0_1 = arith.constant 0 : index
    %c0_2 = arith.constant 0 : index
    %1 = vector.load %arg2[%c0_1, %c0_2] : memref<16x64xbf16, #tpu.memory_space<vmem>>, vector<16x64xbf16>
    %cst = arith.constant dense<0.000000e+00> : vector<16x64xf32>
    %2 = tpu.matmul %0, %1, %cst {dimension_numbers = #tpu.dot_dimension_numbers<[1], [0], [0], [1], [0, 0, 1, 1], [], []>} : vector<16x16xbf16>, vector<16x64xbf16>, vector<16x64xf32> -> vector<16x64xf32>
    %c0_3 = arith.constant 0 : index
    %c0_4 = arith.constant 0 : index
    %3 = vector.load %arg3[%c0_3, %c0_4] : memref<1x64xf32, #tpu.memory_space<vmem>>, vector<1x64xf32>
    %4 = vector.broadcast %3 : vector<1x64xf32> to vector<16x64xf32>
    %5 = arith.addf %2, %4 : vector<16x64xf32>
    %cst_5 = arith.constant 0.000000e+00 : f32
    %6 = vector.broadcast %cst_5 : f32 to vector<16x64xf32>
    %7 = arith.maximumf %5, %6 : vector<16x64xf32>
    %8 = arith.truncf %7 : vector<16x64xf32> to vector<16x64xbf16>
    %c0_6 = arith.constant 0 : index
    %c0_7 = arith.constant 0 : index
    %9 = vector.load %arg4[%c0_6, %c0_7] : memref<64x6xbf16, #tpu.memory_space<vmem>>, vector<64x6xbf16>
    %cst_8 = arith.constant dense<0.000000e+00> : vector<16x6xf32>
    %10 = tpu.matmul %8, %9, %cst_8 {dimension_numbers = #tpu.dot_dimension_numbers<[1], [0], [0], [1], [0, 0, 1, 1], [], []>} : vector<16x64xbf16>, vector<64x6xbf16>, vector<16x6xf32> -> vector<16x6xf32>
    %c0_9 = arith.constant 0 : index
    %c0_10 = arith.constant 0 : index
    %11 = vector.load %arg5[%c0_9, %c0_10] : memref<1x6xf32, #tpu.memory_space<vmem>>, vector<1x6xf32>
    %12 = vector.broadcast %11 : vector<1x6xf32> to vector<16x6xf32>
    %13 = arith.addf %10, %12 : vector<16x6xf32>
    %cst_11 = arith.constant dense<0xFF800000> : vector<16xf32>
    %14 = vector.multi_reduction <maximumf>, %13, %cst_11 [1] : vector<16x6xf32> to vector<16xf32>
    %15 = vector.shape_cast %14 : vector<16xf32> to vector<16x1xf32>
    %16 = vector.broadcast %15 : vector<16x1xf32> to vector<16x6xf32>
    %17 = arith.subf %13, %16 : vector<16x6xf32>
    %18 = math.exp %17 : vector<16x6xf32>
    %cst_12 = arith.constant dense<0.000000e+00> : vector<16xf32>
    %19 = vector.multi_reduction <add>, %18, %cst_12 [1] : vector<16x6xf32> to vector<16xf32>
    %20 = vector.shape_cast %19 : vector<16xf32> to vector<16x1xf32>
    %21 = tpu.reciprocal %20 {approx = true} : vector<16x1xf32> -> vector<16x1xf32>
    %22 = vector.broadcast %21 : vector<16x1xf32> to vector<16x6xf32>
    %23 = arith.mulf %18, %22 : vector<16x6xf32>
    %c0_13 = arith.constant 0 : index
    %c0_14 = arith.constant 0 : index
    %24 = vector.load %arg6[%c0_13, %c0_14] : memref<16x6xf32, #tpu.memory_space<vmem>>, vector<16x6xf32>
    tpu.vector_store %arg6[%c0_13, %c0_14], %23 {strides = array<i32>} : memref<16x6xf32, #tpu.memory_space<vmem>>, vector<16x6xf32>,
    return
  }
  func.func @transform_0(%arg0: i32) -> (i32, i32) {
    %c0_i32 = arith.constant 0 : i32
    %c0_i32_0 = arith.constant 0 : i32
    return %arg0, %c0_i32 : i32, i32
  }
  func.func @transform_1(%arg0: i32) -> (i32, i32) {
    %c0_i32 = arith.constant 0 : i32
    %c0_i32_0 = arith.constant 0 : i32
    %c0_i32_1 = arith.constant 0 : i32
    return %c0_i32, %c0_i32_0 : i32, i32
  }
  func.func @transform_2(%arg0: i32) -> (i32, i32) {
    %c0_i32 = arith.constant 0 : i32
    %c0_i32_0 = arith.constant 0 : i32
    %c0_i32_1 = arith.constant 0 : i32
    return %c0_i32, %c0_i32_0 : i32, i32
  }
  func.func @transform_3(%arg0: i32) -> (i32, i32) {
    %c0_i32 = arith.constant 0 : i32
    %c0_i32_0 = arith.constant 0 : i32
    %c0_i32_1 = arith.constant 0 : i32
    return %c0_i32, %c0_i32_0 : i32, i32
  }
  func.func @transform_4(%arg0: i32) -> (i32, i32) {
    %c0_i32 = arith.constant 0 : i32
    %c0_i32_0 = arith.constant 0 : i32
    %c0_i32_1 = arith.constant 0 : i32
    return %c0_i32, %c0_i32_0 : i32, i32
  }
  func.func @transform_5(%arg0: i32) -> (i32, i32) {
    %c0_i32 = arith.constant 0 : i32
    %c0_i32_0 = arith.constant 0 : i32
    return %arg0, %c0_i32 : i32, i32
  }
}

</mosaic_0001>

<llo_original>
// kernel: tpu_custom_call.1
$region0: #{tpu_custom_call.1}
  #allocation0 [shape = 'u32[]', space=smem, size = 0x4, offset = 0x4, fixed_abs, tag = 'smem constant byte address 0x4 - core index']
  #allocation1 [shape = 'u32[144,128]{1,0:T(1,128)}', space=vmem, size = 0x12000, scoped, tag = 'internal scratch']
  %s0 = inlined_call_operand.vmem [shape: bf16[16,16], index: 0, kind: input, shape index: {}]
  %s1 = inlined_call_operand.vmem [shape: bf16[16,64], index: 1, kind: input, shape index: {}]
  %s2 = inlined_call_operand.vmem [shape: f32[1,64], index: 2, kind: input, shape index: {}]
  %s3 = inlined_call_operand.vmem [shape: bf16[64,6], index: 3, kind: input, shape index: {}]
  %s4 = inlined_call_operand.vmem [shape: f32[1,6], index: 4, kind: input, shape index: {}]
  %s5 = inlined_call_operand.vmem [shape: f32[16,6], index: 5, kind: output, shape index: {}]
  %s6 = sld [smem:[#allocation0]]
  $region30: #{tpu_custom_call.1} parent=0
    _
  %s8 = ssub.s32 1, %s6
  %s9 = scalar_select 0, %s8, %s6
  // Predicated region
  $region2: #{tpu_custom_call.1} parent=0 // pred_check
    _
  $region3: #{tpu_custom_call.1} parent=0 // pred_check_branch
    %11 = sbr.rel (0) target = $region5
  $region4: #{tpu_custom_call.1} parent=0 // pred_region
    _
  $region5: #{tpu_custom_call.1} parent=0 // pred_fallthru
    _
  // Predicated region
  $region6: #{tpu_custom_call.1} parent=0 // pred_check
    _
  $region7: #{tpu_custom_call.1} parent=0 // pred_check_branch
    %13 = sbr.rel (0) target = $region9
  $region8: #{tpu_custom_call.1} parent=0 // pred_region
    _
  $region9: #{tpu_custom_call.1} parent=0 // pred_fallthru
    _
  // Predicated region
  $region10: #{tpu_custom_call.1} parent=0 // pred_check
    _
  $region11: #{tpu_custom_call.1} parent=0 // pred_check_branch
    %15 = sbr.rel (0) target = $region13
  $region12: #{tpu_custom_call.1} parent=0 // pred_region
    _
  $region13: #{tpu_custom_call.1} parent=0 // pred_fallthru
    _
  // Predicated region
  $region14: #{tpu_custom_call.1} parent=0 // pred_check
    _
  $region15: #{tpu_custom_call.1} parent=0 // pred_check_branch
    %17 = sbr.rel (0) target = $region17
  $region16: #{tpu_custom_call.1} parent=0 // pred_region
    _
  $region17: #{tpu_custom_call.1} parent=0 // pred_fallthru
    _
  // Predicated region
  $region18: #{tpu_custom_call.1} parent=0 // pred_check
    _
  $region19: #{tpu_custom_call.1} parent=0 // pred_check_branch
    %19 = sbr.rel (0) target = $region21
  $region20: #{tpu_custom_call.1} parent=0 // pred_region
    _
  $region21: #{tpu_custom_call.1} parent=0 // pred_fallthru
    _
  %v21 = vld [vmem:[%s0] sm:$0xf]
  %v22 = vld [vmem:[%s0 + $0x4] sm:$0xf]
  %v23 = vld [vmem:[%s1] sm:$0xf]
  %v24 = vld [vmem:[%s1 + $0x4] sm:$0xf]
  %v25 = vld [vmem:[%s2] sm:$0x1]
  %v27 = vlaneseq
  %v28 = vshrl.u32 %v27, 7
  %v29 = vsub.s32 0, %v28
  %v30 = vrot.slane %v25, %v29
  %v34 = vunpack.c.l.b16 %v21
  %v35 = vunpack.c.l.b16 %v22
  %v36 = vpack.c.b16 %v35, %v34
  %v39 = vunpack.c.l.b16 %v23
  %v40 = vunpack.c.l.b16 %v24
  %v41 = vpack.c.b16 %v40, %v39
  %vm43 = vcmask 130048
  %v45 = vsel %vm43, %v36, 0
  %47 = vmatprep.subr.bf16.mxu0 0
  %48 = vmatpush1.bf16.msra.mxu0 %v41
  %49 = vmatprep.subr.bf16.mxu0 0
  %50 = vmatpush1.bf16.msra.mxu0 0
  %51 = vmatprep.subr.bf16.mxu0 0
  %52 = vmatpush1.bf16.msra.mxu0 0
  %53 = vmatprep.subr.bf16.mxu0 0
  %54 = vmatpush1.bf16.msra.mxu0 0
  %55 = vmatprep.subr.bf16.mxu0 0
  %56 = vmatpush1.bf16.msra.mxu0 0
  %57 = vmatprep.subr.bf16.mxu0 0
  %58 = vmatpush1.bf16.msra.mxu0 0
  %59 = vmatprep.subr.bf16.mxu0 0
  %60 = vmatpush1.bf16.msra.mxu0 0
  %61 = vmatprep.subr.bf16.mxu0 0
  %62 = vmatpush1.bf16.msra.mxu0 0
  %63 = vmatprep.subr.bf16.mxu0 0
  %64 = vmatpush1.bf16.msra.mxu0 0
  %65 = vmatprep.subr.bf16.mxu0 0
  %66 = vmatpush1.bf16.msra.mxu0 0
  %67 = vmatprep.subr.bf16.mxu0 0
  %68 = vmatpush1.bf16.msra.mxu0 0
  %69 = vmatprep.subr.bf16.mxu0 0
  %70 = vmatpush1.bf16.msra.mxu0 0
  %71 = vmatprep.subr.bf16.mxu0 0
  %72 = vmatpush1.bf16.msra.mxu0 0
  %73 = vmatprep.subr.bf16.mxu0 0
  %74 = vmatpush1.bf16.msra.mxu0 0
  %75 = vmatprep.subr.bf16.mxu0 0
  %76 = vmatpush1.bf16.msra.mxu0 0
  %77 = vmatprep.subr.bf16.mxu0 0
  %78 = vmatpush1.bf16.msra.mxu0 0
  %79 = vmatprep.mubr.bf16.mxu0 0
  %80 = vmatmul.mubr.bf16.gmra.mrb[0].mxu0 %v45
  %v81 = vpop.f32.mrb[0].mxu0
  %v82 = vadd.f32 %v30, %v81
  %v83 = vpop.f32.mrb[0].mxu0
  %v84 = vpop.f32.mrb[0].mxu0
  %v85 = vadd.f32 %v30, %v84
  %v86 = vpop.f32.mrb[0].mxu0
  %87 = vdwg.mxu0
  %v88 = vmax.f32 %v82, 0.0
  %v89 = vmax.f32 %v85, 0.0
  %v90 = vpack.c.bf16 %v89, %v88
  %v91 = vld [vmem:[%s3] sm:$0xf]
  %v92 = vld [vmem:[%s3 + $0x4] sm:$0xf]
  %v93 = vld [vmem:[%s3 + $0x8] sm:$0xf]
  %v94 = vld [vmem:[%s3 + $0xc] sm:$0xf]
  %v95 = vld [vmem:[%s3 + $0x10] sm:$0xf]
  %v96 = vld [vmem:[%s3 + $0x14] sm:$0xf]
  %v97 = vld [vmem:[%s3 + $0x18] sm:$0xf]
  %v98 = vld [vmem:[%s3 + $0x1c] sm:$0xf]
  %v99 = vld [vmem:[%s4] sm:$0x1]
  %v101 = vlaneseq
  %v102 = vshrl.u32 %v101, 7
  %v103 = vsub.s32 0, %v102
  %v104 = vrot.slane %v99, %v103
  %v114 = vunpack.c.l.b16 %v91
  %v115 = vunpack.c.l.b16 %v92
  %v116 = vunpack.c.l.b16 %v93
  %v117 = vunpack.c.l.b16 %v94
  %v118 = vunpack.c.l.b16 %v95
  %v119 = vunpack.c.l.b16 %v96
  %v120 = vunpack.c.l.b16 %v97
  %v121 = vunpack.c.l.b16 %v98
  %v122 = vpack.c.b16 %v115, %v114
  %v123 = vpack.c.b16 %v117, %v116
  %v124 = vpack.c.b16 %v119, %v118
  %v125 = vpack.c.b16 %v121, %v120
  %vm130 = vcmask 523264
  %v132 = vsel %vm130, %v90, 0
  %134 = vmatprep.subr.bf16.mxu0 0
  %135 = vmatpush1.bf16.msra.mxu0 %v122
  %136 = vmatprep.subr.bf16.mxu0 0
  %137 = vmatpush1.bf16.msra.mxu0 %v123
  %138 = vmatprep.subr.bf16.mxu0 0
  %139 = vmatpush1.bf16.msra.mxu0 %v124
  %140 = vmatprep.subr.bf16.mxu0 0
  %141 = vmatpush1.bf16.msra.mxu0 %v125
  %142 = vmatprep.subr.bf16.mxu0 0
  %143 = vmatpush1.bf16.msra.mxu0 0
  %144 = vmatprep.subr.bf16.mxu0 0
  %145 = vmatpush1.bf16.msra.mxu0 0
  %146 = vmatprep.subr.bf16.mxu0 0
  %147 = vmatpush1.bf16.msra.mxu0 0
  %148 = vmatprep.subr.bf16.mxu0 0
  %149 = vmatpush1.bf16.msra.mxu0 0
  %150 = vmatprep.subr.bf16.mxu0 0
  %151 = vmatpush1.bf16.msra.mxu0 0
  %152 = vmatprep.subr.bf16.mxu0 0
  %153 = vmatpush1.bf16.msra.mxu0 0
  %154 = vmatprep.subr.bf16.mxu0 0
  %155 = vmatpush1.bf16.msra.mxu0 0
  %156 = vmatprep.subr.bf16.mxu0 0
  %157 = vmatpush1.bf16.msra.mxu0 0
  %158 = vmatprep.subr.bf16.mxu0 0
  %159 = vmatpush1.bf16.msra.mxu0 0
  %160 = vmatprep.subr.bf16.mxu0 0
  %161 = vmatpush1.bf16.msra.mxu0 0
  %162 = vmatprep.subr.bf16.mxu0 0
  %163 = vmatpush1.bf16.msra.mxu0 0
  %164 = vmatprep.subr.bf16.mxu0 0
  %165 = vmatpush1.bf16.msra.mxu0 0
  %166 = vmatprep.mubr.bf16.mxu0 0
  %167 = vmatmul.mubr.bf16.gmra.mrb[0].mxu0 %v132
  %v168 = vpop.f32.mrb[0].mxu0
  %v169 = vadd.f32 %v104, %v168
  %v170 = vpop.f32.mrb[0].mxu0
  %v171 = vpop.f32.mrb[0].mxu0
  %v172 = vadd.f32 %v104, %v171
  %v173 = vpop.f32.mrb[0].mxu0
  %174 = vdwg.mxu0
  %vm175 = vcmask 48128
  %v176 = vsel %vm175, %v169, -inf
  %177 = vmax.xlane.f32.xlu0 %v176
  %v178 = vpop.xlane.xlu0 %177
  %v179 = vsel %vm175, %v172, -inf
  %180 = vmax.xlane.f32.xlu0 %v179
  %v181 = vpop.xlane.xlu0 %180
  %v182 = vsub.f32 %v169, %v178
  %v183 = vsub.f32 %v172, %v181
  %v184 = vmul.f32 %v182, 1.442695
  %v185 = vpow.pop %v184
  %v186 = vmul.f32 %v183, 1.442695
  %v187 = vpow.pop %v186
  %v188 = vsel %vm175, %v185, 0.0
  %189 = vadd.xlane.f32.xlu0 %v188
  %v190 = vpop.xlane.xlu0 %189
  %v191 = vsel %vm175, %v187, 0.0
  %192 = vadd.xlane.f32.xlu0 %v191
  %v193 = vpop.xlane.xlu0 %192
  %v194 = vrcp.pop %v190
  %v195 = vrcp.pop %v193
  %v196 = vmul.f32 %v185, %v194
  %v197 = vmul.f32 %v187, %v195
  %198 = vst.msk [vmem:[%s5] sm:$0xff] %vm175, %v196
  %199 = vst.msk [vmem:[%s5 + $0x8] sm:$0xff] %vm175, %v197
  // Predicated region
  $region22: #{tpu_custom_call.1} parent=0 // pred_check
    _
  $region23: #{tpu_custom_call.1} parent=0 // pred_check_branch
    %201 = sbr.rel (0) target = $region25
  $region24: #{tpu_custom_call.1} parent=0 // pred_region
    _
  $region25: #{tpu_custom_call.1} parent=0 // pred_fallthru
    _
  // Predicated region
  $region26: #{tpu_custom_call.1} parent=0 // pred_check
    _
  $region27: #{tpu_custom_call.1} parent=0 // pred_check_branch
    %203 = sbr.rel (0) target = $region29
  $region28: #{tpu_custom_call.1} parent=0 // pred_region
    _
  $region29: #{tpu_custom_call.1} parent=0 // pred_fallthru
    _

</llo_original>
